<compile_context>
chip_gen: v6e
topology: v6e:2x2x1
jax: 0.10.0
libtpu: 0.0.40
codegen_flags: <defaults>
</compile_context>

<pallas_src>
import jax
import jax.numpy as jnp
from jax.experimental import pallas as pl
from jax.experimental.pallas import tpu as pltpu


def _round_up(x, m):
    return ((x + m - 1) // m) * m


def invariant_dense_kernel(x_ref, w1_ref, b1_ref, w2_ref, b2_ref, o_ref):
    # Layer 1: linear (MXU, f32 accumulation) + bias + swish (f32, VPU/EUP).
    h = jnp.dot(x_ref[...], w1_ref[...], preferred_element_type=jnp.float32)
    h = h + b1_ref[...]                       # (1, dim) broadcast over rows
    h = h * jax.nn.sigmoid(h)                 # swish / SiLU in f32

    # Layer 2: linear + bias (no activation).  Cast h back to the weight dtype
    # for the MXU (no-op for f32 weights, bf16 fast path otherwise).
    out = jnp.dot(h.astype(w2_ref.dtype), w2_ref[...],
                  preferred_element_type=jnp.float32)
    o_ref[...] = (out + b2_ref[...]).astype(o_ref.dtype)


def _vmem_limit_bytes():
    """Generation-aware scoped-VMEM limit: ~48 MiB on v7x (64 MiB VMEM/TC),
    64 MiB on v5e/v6e (128 MiB VMEM)."""
    mib = 1024 * 1024
    try:
        cap = int(getattr(pltpu.get_tpu_info(), "vmem_capacity_bytes", 64 * mib))
    except Exception:
        cap = 64 * mib
    return int(max(16 * mib, min(cap - 16 * mib, 64 * mib)))


def _pick_tile_n(n, dim, out_dim, itemsize, budget_bytes, max_tile=2048):
    """Largest row tile fitting the VMEM budget, 256-aligned when possible."""
    dim_l = _round_up(dim, 128)               # VMEM lane footprint
    out_l = _round_up(out_dim, 128)
    # Resident weights/biases (pipeline allocates 2 buffers even for constant
    # index_maps) + per-row cost: double-buffered x/out streams + f32 temps.
    resident = 2 * ((dim_l * dim_l + dim_l * out_l) * itemsize
                    + (dim_l + out_l) * 4)
    per_row = 2 * (dim_l + out_l) * itemsize + (dim_l + out_l) * 4
    avail = max(budget_bytes - resident, per_row * 8)
    tile = min(max_tile, avail // per_row)
    n8 = _round_up(n, 8)
    if tile >= n8:                            # single block covers all rows
        return int(min(n8, max_tile))
    if tile >= 256:                           # match 256-wide MXU on v6e/v7x
        return int((tile // 256) * 256)
    return int(max(8, (tile // 8) * 8))


def invariant_dense(s_j, w1, b1, w2, b2, *, stream_dtype=None):
    """s_j: [N, dim]; w1: [dim, dim]; b1: [dim]; w2: [dim, 3*dim]; b2: [3*dim].

    Weights are stored pre-transposed as [in, out].  Pass
    stream_dtype=jnp.bfloat16 for the halved-HBM-traffic fast path.
    """
    n, dim = s_j.shape
    out_dim = w2.shape[1]
    assert w1.shape == (dim, dim) and b1.shape == (dim,)
    assert w2.shape == (dim, out_dim) and b2.shape == (out_dim,)

    if stream_dtype is not None:
        s_j = s_j.astype(stream_dtype)
        w1 = w1.astype(stream_dtype)
        w2 = w2.astype(stream_dtype)

    dtype = s_j.dtype
    itemsize = jnp.dtype(dtype).itemsize

    vmem_limit = _vmem_limit_bytes()
    tile_n = _pick_tile_n(n, dim, out_dim, itemsize,
                          budget_bytes=vmem_limit - 8 * 1024 * 1024)
    grid = (pl.cdiv(n, tile_n),)              # ragged last block is masked

    # Biases as (1, feat) f32 rows (tiny copies; bias add stays in f32).
    b1_2d = b1.reshape(1, dim).astype(jnp.float32)
    b2_2d = b2.reshape(1, out_dim).astype(jnp.float32)

    cost = pl.CostEstimate(
        flops=2 * n * dim * (dim + out_dim),
        transcendentals=n * dim,
        bytes_accessed=(n * (dim + out_dim) + dim * (dim + out_dim)) * itemsize
                       + (dim + out_dim) * 4,
    )

    return pl.pallas_call(
        invariant_dense_kernel,
        out_shape=jax.ShapeDtypeStruct((n, out_dim), dtype),
        grid=grid,
        in_specs=[
            pl.BlockSpec((tile_n, dim), lambda i: (i, 0)),      # x: tiled rows
            pl.BlockSpec((dim, dim), lambda i: (0, 0)),         # w1: resident
            pl.BlockSpec((1, dim), lambda i: (0, 0)),           # b1: resident
            pl.BlockSpec((dim, out_dim), lambda i: (0, 0)),     # w2: resident
            pl.BlockSpec((1, out_dim), lambda i: (0, 0)),       # b2: resident
        ],
        out_specs=pl.BlockSpec((tile_n, out_dim), lambda i: (i, 0)),
        compiler_params=pltpu.CompilerParams(
            dimension_semantics=("parallel",),  # independent row tiles
            vmem_limit_bytes=vmem_limit,
        ),
        cost_estimate=cost,
    )(s_j, w1, b1_2d, w2, b2_2d)


def reference(s_j, w1, b1, w2, b2):
    h = s_j @ w1 + b1
    h = h * jax.nn.sigmoid(h)
    return h @ w2 + b2


if __name__ == "__main__":
    key = jax.random.PRNGKey(0)
    dim = 32           # hidden feature size
    n = 16             # number of nodes / edges (rows)

    k_x, k_w1, k_b1, k_w2, k_b2 = jax.random.split(key, 5)
    s_j = jax.random.normal(k_x, (n, dim), dtype=jnp.float32)

    # Deterministic parameter init (nn.Linear(dim,dim), nn.Linear(dim,3*dim)),
    # stored transposed as [in, out].
    w1 = jax.random.normal(k_w1, (dim, dim), dtype=jnp.float32) * 0.1
    b1 = jax.random.normal(k_b1, (dim,), dtype=jnp.float32) * 0.1
    w2 = jax.random.normal(k_w2, (dim, 3 * dim), dtype=jnp.float32) * 0.1
    b2 = jax.random.normal(k_b2, (3 * dim,), dtype=jnp.float32) * 0.1

    out = invariant_dense(s_j, w1, b1, w2, b2)
    out = jax.block_until_ready(out)

    ref = reference(s_j, w1, b1, w2, b2)
    assert out.shape == (n, 3 * dim), out.shape
    assert jnp.allclose(out, ref, atol=1e-5, rtol=1e-5), "mismatch vs reference"

    print("KERNEL_OK")
</pallas_src>

<mosaic_0001>
module attributes {stable_mosaic.version = 11 : i64} {
  func.func @invariant_dense_kernel(%arg0: i32, %arg1: memref<16x32xf32, #tpu.memory_space<vmem>>, %arg2: memref<32x32xf32, #tpu.memory_space<vmem>>, %arg3: memref<1x32xf32, #tpu.memory_space<vmem>>, %arg4: memref<32x96xf32, #tpu.memory_space<vmem>>, %arg5: memref<1x96xf32, #tpu.memory_space<vmem>>, %arg6: memref<16x96xf32, #tpu.memory_space<vmem>>) attributes {dimension_semantics = [#tpu.dimension_semantics<parallel>], iteration_bounds = array<i64: 1>, scalar_prefetch = 0 : i64, scratch_operands = 0 : i64, tpu.core_type = #tpu.core_type<tc>, window_params = [{transform_indices = @transform_0, window_bounds = array<i64: 16, 32>}, {pipeline_mode = #tpu.pipeline_mode<synchronous>, transform_indices = @transform_1, window_bounds = array<i64: 32, 32>}, {pipeline_mode = #tpu.pipeline_mode<synchronous>, transform_indices = @transform_2, window_bounds = array<i64: 1, 32>}, {pipeline_mode = #tpu.pipeline_mode<synchronous>, transform_indices = @transform_3, window_bounds = array<i64: 32, 96>}, {pipeline_mode = #tpu.pipeline_mode<synchronous>, transform_indices = @transform_4, window_bounds = array<i64: 1, 96>}, {transform_indices = @transform_5, window_bounds = array<i64: 16, 96>}]} {
    %c0 = arith.constant 0 : index
    %c0_0 = arith.constant 0 : index
    %0 = vector.load %arg1[%c0, %c0_0] : memref<16x32xf32, #tpu.memory_space<vmem>>, vector<16x32xf32>
    %c0_1 = arith.constant 0 : index
    %c0_2 = arith.constant 0 : index
    %1 = vector.load %arg2[%c0_1, %c0_2] : memref<32x32xf32, #tpu.memory_space<vmem>>, vector<32x32xf32>
    %cst = arith.constant dense<0.000000e+00> : vector<16x32xf32>
    %2 = tpu.matmul %0, %1, %cst {dimension_numbers = #tpu.dot_dimension_numbers<[1], [0], [0], [1], [0, 0, 1, 1], [], []>} : vector<16x32xf32>, vector<32x32xf32>, vector<16x32xf32> -> vector<16x32xf32>
    %c0_3 = arith.constant 0 : index
    %c0_4 = arith.constant 0 : index
    %3 = vector.load %arg3[%c0_3, %c0_4] : memref<1x32xf32, #tpu.memory_space<vmem>>, vector<1x32xf32>
    %4 = vector.broadcast %3 : vector<1x32xf32> to vector<16x32xf32>
    %5 = arith.addf %2, %4 : vector<16x32xf32>
    %6 = arith.negf %5 : vector<16x32xf32>
    %7 = math.exp %6 : vector<16x32xf32>
    %cst_5 = arith.constant 1.000000e+00 : f32
    %8 = vector.broadcast %cst_5 : f32 to vector<16x32xf32>
    %9 = arith.addf %8, %7 : vector<16x32xf32>
    %10 = arith.divf %8, %9 : vector<16x32xf32>
    %11 = arith.mulf %5, %10 : vector<16x32xf32>
    %c0_6 = arith.constant 0 : index
    %c0_7 = arith.constant 0 : index
    %12 = vector.load %arg4[%c0_6, %c0_7] : memref<32x96xf32, #tpu.memory_space<vmem>>, vector<32x96xf32>
    %cst_8 = arith.constant dense<0.000000e+00> : vector<16x96xf32>
    %13 = tpu.matmul %11, %12, %cst_8 {dimension_numbers = #tpu.dot_dimension_numbers<[1], [0], [0], [1], [0, 0, 1, 1], [], []>} : vector<16x32xf32>, vector<32x96xf32>, vector<16x96xf32> -> vector<16x96xf32>
    %c0_9 = arith.constant 0 : index
    %c0_10 = arith.constant 0 : index
    %14 = vector.load %arg5[%c0_9, %c0_10] : memref<1x96xf32, #tpu.memory_space<vmem>>, vector<1x96xf32>
    %15 = vector.broadcast %14 : vector<1x96xf32> to vector<16x96xf32>
    %16 = arith.addf %13, %15 : vector<16x96xf32>
    %c0_11 = arith.constant 0 : index
    %c0_12 = arith.constant 0 : index
    %17 = vector.load %arg6[%c0_11, %c0_12] : memref<16x96xf32, #tpu.memory_space<vmem>>, vector<16x96xf32>
    tpu.vector_store %arg6[%c0_11, %c0_12], %16 {strides = array<i32>} : memref<16x96xf32, #tpu.memory_space<vmem>>, vector<16x96xf32>,
    return
  }
  func.func @transform_0(%arg0: i32) -> (i32, i32) {
    %c0_i32 = arith.constant 0 : i32
    %c0_i32_0 = arith.constant 0 : i32
    return %arg0, %c0_i32 : i32, i32
  }
  func.func @transform_1(%arg0: i32) -> (i32, i32) {
    %c0_i32 = arith.constant 0 : i32
    %c0_i32_0 = arith.constant 0 : i32
    %c0_i32_1 = arith.constant 0 : i32
    return %c0_i32, %c0_i32_0 : i32, i32
  }
  func.func @transform_2(%arg0: i32) -> (i32, i32) {
    %c0_i32 = arith.constant 0 : i32
    %c0_i32_0 = arith.constant 0 : i32
    %c0_i32_1 = arith.constant 0 : i32
    return %c0_i32, %c0_i32_0 : i32, i32
  }
  func.func @transform_3(%arg0: i32) -> (i32, i32) {
    %c0_i32 = arith.constant 0 : i32
    %c0_i32_0 = arith.constant 0 : i32
    %c0_i32_1 = arith.constant 0 : i32
    return %c0_i32, %c0_i32_0 : i32, i32
  }
  func.func @transform_4(%arg0: i32) -> (i32, i32) {
    %c0_i32 = arith.constant 0 : i32
    %c0_i32_0 = arith.constant 0 : i32
    %c0_i32_1 = arith.constant 0 : i32
    return %c0_i32, %c0_i32_0 : i32, i32
  }
  func.func @transform_5(%arg0: i32) -> (i32, i32) {
    %c0_i32 = arith.constant 0 : i32
    %c0_i32_0 = arith.constant 0 : i32
    return %arg0, %c0_i32 : i32, i32
  }
}

</mosaic_0001>

<llo_original>
// kernel: tpu_custom_call.1
$region0: #{tpu_custom_call.1}
  #allocation0 [shape = 'u32[]', space=smem, size = 0x4, offset = 0x4, fixed_abs, tag = 'smem constant byte address 0x4 - core index']
  #allocation1 [shape = 'u32[144,128]{1,0:T(1,128)}', space=vmem, size = 0x12000, scoped, tag = 'internal scratch']
  %s0 = inlined_call_operand.hbm [shape: f32[16,32], index: 0, kind: input, shape index: {}]
  %s1 = inlined_call_operand.hbm [shape: f32[32,32], index: 1, kind: input, shape index: {}]
  %s2 = inlined_call_operand.vmem [shape: f32[1,32], index: 2, kind: input, shape index: {}]
  %s3 = inlined_call_operand.hbm [shape: f32[32,96], index: 3, kind: input, shape index: {}]
  %s4 = inlined_call_operand.vmem [shape: f32[1,96], index: 4, kind: input, shape index: {}]
  %s5 = inlined_call_operand.hbm [shape: f32[16,96], index: 5, kind: output, shape index: {}]
  %s6 = sld [smem:[#allocation0]]
  $region42: #{tpu_custom_call.1} parent=0
    _
  %s8 = ssub.s32 1, %s6
  %s9 = scalar_select 0, %s8, %s6
  $region1: #{tpu_custom_call.1} parent=0
    #allocation2 [shape = 'u8[8192]{0}', space=vmem, size = 0x2000, scoped, tag = 'input window, operand 0, single buffered']
    #allocation3 [shape = 's32[1]{0}', space=sflag, size = 0x4, scoped, tag = 'scoped memory for tpu_custom_call.1']
    #allocation4 [shape = 's32[1]{0}', space=sflag, size = 0x4, scoped, tag = 'scoped memory for tpu_custom_call.1']
    #allocation5 [shape = 'u8[16384]{0}', space=vmem, size = 0x4000, scoped, tag = 'input window, operand 1, single buffered']
    #allocation6 [shape = 's32[1]{0}', space=sflag, size = 0x4, scoped, tag = 'scoped memory for tpu_custom_call.1']
    #allocation7 [shape = 'u8[16384]{0}', space=vmem, size = 0x4000, scoped, tag = 'input window, operand 3, single buffered']
    #allocation8 [shape = 'u8[8192]{0}', space=vmem, size = 0x2000, scoped, tag = 'output window, operand 0, single buffered']
    %10 = vsyncpa [#allocation3], 0
    %11 = vsyncpa [#allocation6], 0
    %12 = vsyncpa [#allocation4], 0
    // Predicated region
    $region2: #{tpu_custom_call.1} parent=1 // pred_check
      _
    $region3: #{tpu_custom_call.1} parent=1 // pred_check_branch
      %14 = sbr.rel (0) target = $region5
    $region4: #{tpu_custom_call.1} parent=1 // pred_region
      %s16 = ssub.s32 256, 256
      %17 = vsyncadd [#allocation3], %s16
      %s18 = sshll.u32 [#allocation2], 4
      %s19 = int_to_ptr.vmem [resolvable:$true] %s18
      %24 = dma.hbm_to_vmem [thread:$0]  %s0, 256, %s19, [#allocation3], 128, 128, 8
    $region5: #{tpu_custom_call.1} parent=1 // pred_fallthru
      _
    // Predicated region
    $region6: #{tpu_custom_call.1} parent=1 // pred_check
      _
    $region7: #{tpu_custom_call.1} parent=1 // pred_check_branch
      %26 = sbr.rel (0) target = $region9
    $region8: #{tpu_custom_call.1} parent=1 // pred_region
      %s28 = ssub.s32 512, 512
      %29 = vsyncadd [#allocation6], %s28
      %s30 = sshll.u32 [#allocation5], 4
      %s31 = int_to_ptr.vmem [resolvable:$true] %s30
      %36 = dma.hbm_to_vmem [thread:$0]  %s1, 512, %s31, [#allocation6], 128, 128, 8
    $region9: #{tpu_custom_call.1} parent=1 // pred_fallthru
      _
    // Predicated region
    $region10: #{tpu_custom_call.1} parent=1 // pred_check
      _
    $region11: #{tpu_custom_call.1} parent=1 // pred_check_branch
      %38 = sbr.rel (0) target = $region13
    $region12: #{tpu_custom_call.1} parent=1 // pred_region
      _
    $region13: #{tpu_custom_call.1} parent=1 // pred_fallthru
      _
    // Predicated region
    $region14: #{tpu_custom_call.1} parent=1 // pred_check
      _
    $region15: #{tpu_custom_call.1} parent=1 // pred_check_branch
      %40 = sbr.rel (0) target = $region17
    $region16: #{tpu_custom_call.1} parent=1 // pred_region
      %s42 = ssub.s32 512, 512
      %43 = vsyncadd [#allocation6], %s42
      %s44 = sshll.u32 [#allocation7], 4
      %s45 = int_to_ptr.vmem [resolvable:$true] %s44
      %50 = dma.hbm_to_vmem [thread:$0]  %s3, 512, %s45, [#allocation6], 128, 128, 8
    $region17: #{tpu_custom_call.1} parent=1 // pred_fallthru
      _
    // Predicated region
    $region18: #{tpu_custom_call.1} parent=1 // pred_check
      _
    $region19: #{tpu_custom_call.1} parent=1 // pred_check_branch
      %52 = sbr.rel (0) target = $region21
    $region20: #{tpu_custom_call.1} parent=1 // pred_region
      _
    $region21: #{tpu_custom_call.1} parent=1 // pred_fallthru
      _
    // Predicated region
    $region22: #{tpu_custom_call.1} parent=1 // pred_check
      _
    $region23: #{tpu_custom_call.1} parent=1 // pred_check_branch
      %54 = sbr.rel (0) target = $region25
    $region24: #{tpu_custom_call.1} parent=1 // pred_region
      %55 = dma.done [#allocation3], 256
    $region25: #{tpu_custom_call.1} parent=1 // pred_fallthru
      _
    // Predicated region
    $region26: #{tpu_custom_call.1} parent=1 // pred_check
      _
    $region27: #{tpu_custom_call.1} parent=1 // pred_check_branch
      %57 = sbr.rel (0) target = $region29
    $region28: #{tpu_custom_call.1} parent=1 // pred_region
      %58 = dma.done [#allocation6], 512
    $region29: #{tpu_custom_call.1} parent=1 // pred_fallthru
      _
    // Predicated region
    $region30: #{tpu_custom_call.1} parent=1 // pred_check
      _
    $region31: #{tpu_custom_call.1} parent=1 // pred_check_branch
      %60 = sbr.rel (0) target = $region33
    $region32: #{tpu_custom_call.1} parent=1 // pred_region
      %61 = dma.done [#allocation6], 512
    $region33: #{tpu_custom_call.1} parent=1 // pred_fallthru
      _
    %v62 = vld [vmem:[#allocation2] sm:$0xff]
    %v63 = vld [vmem:[#allocation2 + $0x8] sm:$0xff]
    %v64 = vld [vmem:[#allocation5] sm:$0xff]
    %v65 = vld [vmem:[#allocation5 + $0x8] sm:$0xff]
    %v66 = vld [vmem:[#allocation5 + $0x10] sm:$0xff]
    %v67 = vld [vmem:[#allocation5 + $0x18] sm:$0xff]
    %v68 = vld [vmem:[%s2] sm:$0x1]
    %v70 = vlaneseq
    %v71 = vshrl.u32 %v70, 7
    %v72 = vsub.s32 0, %v71
    %v73 = vrot.slane %v68, %v72
    %vm75 = vcmask 261120
    %v77 = vsel %vm75, %v62, 0
    %v80 = vsel %vm75, %v63, 0
    %82 = vmatprep.subr.mxu0 0.0
    %83 = vmatpush1.msra.mxu0 0.0
    %84 = vmatprep.subr.mxu0 0.0
    %85 = vmatpush1.msra.mxu0 0.0
    %86 = vmatprep.subr.mxu0 0.0
    %87 = vmatpush1.msra.mxu0 0.0
    %88 = vmatprep.subr.mxu0 0.0
    %89 = vmatpush1.msra.mxu0 0.0
    %90 = vmatprep.subr.mxu0 0.0
    %91 = vmatpush1.msra.mxu0 0.0
    %92 = vmatprep.subr.mxu0 0.0
    %93 = vmatpush1.msra.mxu0 0.0
    %94 = vmatprep.subr.mxu0 0.0
    %95 = vmatpush1.msra.mxu0 0.0
    %96 = vmatprep.subr.mxu0 0.0
    %97 = vmatpush1.msra.mxu0 0.0
    %98 = vmatprep.subr.mxu0 0.0
    %99 = vmatpush1.msra.mxu0 0.0
    %100 = vmatprep.subr.mxu0 0.0
    %101 = vmatpush1.msra.mxu0 0.0
    %102 = vmatprep.subr.mxu0 0.0
    %103 = vmatpush1.msra.mxu0 0.0
    %104 = vmatprep.subr.mxu0 0.0
    %105 = vmatpush1.msra.mxu0 0.0
    %106 = vmatprep.subr.mxu0 0.0
    %107 = vmatpush1.msra.mxu0 %v67
    %108 = vmatprep.subr.mxu0 0.0
    %109 = vmatpush1.msra.mxu0 %v66
    %110 = vmatprep.subr.mxu0 0.0
    %111 = vmatpush1.msra.mxu0 %v65
    %112 = vmatprep.subr.mxu0 0.0
    %113 = vmatpush1.msra.mxu0 %v64
    %114 = vmatprep.subr.mxu0 0.0
    %115 = vmatpush2.msra.mxu0 0.0
    %116 = vmatprep.subr.mxu0 0.0
    %117 = vmatpush2.msra.mxu0 0.0
    %118 = vmatprep.subr.mxu0 0.0
    %119 = vmatpush2.msra.mxu0 0.0
    %120 = vmatprep.subr.mxu0 0.0
    %121 = vmatpush2.msra.mxu0 0.0
    %122 = vmatprep.subr.mxu0 0.0
    %123 = vmatpush2.msra.mxu0 0.0
    %124 = vmatprep.subr.mxu0 0.0
    %125 = vmatpush2.msra.mxu0 0.0
    %126 = vmatprep.subr.mxu0 0.0
    %127 = vmatpush2.msra.mxu0 0.0
    %128 = vmatprep.subr.mxu0 0.0
    %129 = vmatpush2.msra.mxu0 0.0
    %130 = vmatprep.subr.mxu0 0.0
    %131 = vmatpush2.msra.mxu0 0.0
    %132 = vmatprep.subr.mxu0 0.0
    %133 = vmatpush2.msra.mxu0 0.0
    %134 = vmatprep.subr.mxu0 0.0
    %135 = vmatpush2.msra.mxu0 0.0
    %136 = vmatprep.subr.mxu0 0.0
    %137 = vmatpush2.msra.mxu0 0.0
    %138 = vmatprep.subr.mxu0 0.0
    %139 = vmatpush2.msra.mxu0 0.0
    %140 = vmatprep.subr.mxu0 0.0
    %141 = vmatpush2.msra.mxu0 0.0
    %142 = vmatprep.subr.mxu0 0.0
    %143 = vmatpush2.msra.mxu0 0.0
    %144 = vmatprep.subr.mxu0 0.0
    %145 = vmatpush2.msra.mxu0 0.0
    %146 = vmatprep.mubr.f32.mxu0 0.0
    %147 = vmatmul.mubr.f32.gmra.mxu0 %v77
    %v148 = vpop.f32.mrf.mxu0
    %v149 = vadd.f32 %v73, %v148
    %v150 = vpop.f32.mrf.mxu0
    %151 = vmatprep.mubr.f32.mxu0 0.0
    %152 = vmatmul.mubr.f32.gmra.mxu0 %v80
    %v153 = vpop.f32.mrf.mxu0
    %v154 = vadd.f32 %v73, %v153
    %v155 = vpop.f32.mrf.mxu0
    %156 = vdwg.mxu0
    %v157 = vxor.u32 %v149, 2147483648
    %v158 = vxor.u32 %v154, 2147483648
    %v159 = vmul.f32 %v157, 1.442695
    %v160 = vpow.pop %v159
    %v161 = vmul.f32 %v158, 1.442695
    %v162 = vpow.pop %v161
    %v163 = vadd.f32 %v160, 1.0
    %v164 = vadd.f32 %v162, 1.0
    %v165 = vrcp.pop %v163
    %v166 = vmul.f32 1.0, %v165
    %v167 = vrcp.pop %v164
    %v168 = vmul.f32 1.0, %v167
    %v169 = vmul.f32 %v149, %v166
    %v170 = vmul.f32 %v154, %v168
    %v171 = vld [vmem:[#allocation7] sm:$0xff]
    %v172 = vld [vmem:[#allocation7 + $0x8] sm:$0xff]
    %v173 = vld [vmem:[#allocation7 + $0x10] sm:$0xff]
    %v174 = vld [vmem:[#allocation7 + $0x18] sm:$0xff]
    %v175 = vld [vmem:[%s4] sm:$0x1]
    %v177 = vlaneseq
    %v178 = vshrl.u32 %v177, 7
    %v179 = vsub.s32 0, %v178
    %v180 = vrot.slane %v175, %v179
    %v183 = vsel %vm75, %v169, 0
    %v186 = vsel %vm75, %v170, 0
    %188 = vmatprep.subr.mxu0 0.0
    %189 = vmatpush1.msra.mxu0 0.0
    %190 = vmatprep.subr.mxu0 0.0
    %191 = vmatpush1.msra.mxu0 0.0
    %192 = vmatprep.subr.mxu0 0.0
    %193 = vmatpush1.msra.mxu0 0.0
    %194 = vmatprep.subr.mxu0 0.0
    %195 = vmatpush1.msra.mxu0 0.0
    %196 = vmatprep.subr.mxu0 0.0
    %197 = vmatpush1.msra.mxu0 0.0
    %198 = vmatprep.subr.mxu0 0.0
    %199 = vmatpush1.msra.mxu0 0.0
    %200 = vmatprep.subr.mxu0 0.0
    %201 = vmatpush1.msra.mxu0 0.0
    %202 = vmatprep.subr.mxu0 0.0
    %203 = vmatpush1.msra.mxu0 0.0
    %204 = vmatprep.subr.mxu0 0.0
    %205 = vmatpush1.msra.mxu0 0.0
    %206 = vmatprep.subr.mxu0 0.0
    %207 = vmatpush1.msra.mxu0 0.0
    %208 = vmatprep.subr.mxu0 0.0
    %209 = vmatpush1.msra.mxu0 0.0
    %210 = vmatprep.subr.mxu0 0.0
    %211 = vmatpush1.msra.mxu0 0.0
    %212 = vmatprep.subr.mxu0 0.0
    %213 = vmatpush1.msra.mxu0 %v174
    %214 = vmatprep.subr.mxu0 0.0
    %215 = vmatpush1.msra.mxu0 %v173
    %216 = vmatprep.subr.mxu0 0.0
    %217 = vmatpush1.msra.mxu0 %v172
    %218 = vmatprep.subr.mxu0 0.0
    %219 = vmatpush1.msra.mxu0 %v171
    %220 = vmatprep.subr.mxu0 0.0
    %221 = vmatpush2.msra.mxu0 0.0
    %222 = vmatprep.subr.mxu0 0.0
    %223 = vmatpush2.msra.mxu0 0.0
    %224 = vmatprep.subr.mxu0 0.0
    %225 = vmatpush2.msra.mxu0 0.0
    %226 = vmatprep.subr.mxu0 0.0
    %227 = vmatpush2.msra.mxu0 0.0
    %228 = vmatprep.subr.mxu0 0.0
    %229 = vmatpush2.msra.mxu0 0.0
    %230 = vmatprep.subr.mxu0 0.0
    %231 = vmatpush2.msra.mxu0 0.0
    %232 = vmatprep.subr.mxu0 0.0
    %233 = vmatpush2.msra.mxu0 0.0
    %234 = vmatprep.subr.mxu0 0.0
    %235 = vmatpush2.msra.mxu0 0.0
    %236 = vmatprep.subr.mxu0 0.0
    %237 = vmatpush2.msra.mxu0 0.0
    %238 = vmatprep.subr.mxu0 0.0
    %239 = vmatpush2.msra.mxu0 0.0
    %240 = vmatprep.subr.mxu0 0.0
    %241 = vmatpush2.msra.mxu0 0.0
    %242 = vmatprep.subr.mxu0 0.0
    %243 = vmatpush2.msra.mxu0 0.0
    %244 = vmatprep.subr.mxu0 0.0
    %245 = vmatpush2.msra.mxu0 0.0
    %246 = vmatprep.subr.mxu0 0.0
    %247 = vmatpush2.msra.mxu0 0.0
    %248 = vmatprep.subr.mxu0 0.0
    %249 = vmatpush2.msra.mxu0 0.0
    %250 = vmatprep.subr.mxu0 0.0
    %251 = vmatpush2.msra.mxu0 0.0
    %252 = vmatprep.mubr.f32.mxu0 0.0
    %253 = vmatmul.mubr.f32.gmra.mxu0 %v183
    %v254 = vpop.f32.mrf.mxu0
    %v255 = vadd.f32 %v180, %v254
    %v256 = vpop.f32.mrf.mxu0
    %257 = vmatprep.mubr.f32.mxu0 0.0
    %258 = vmatmul.mubr.f32.gmra.mxu0 %v186
    %v259 = vpop.f32.mrf.mxu0
    %v260 = vadd.f32 %v180, %v259
    %v261 = vpop.f32.mrf.mxu0
    %262 = vdwg.mxu0
    %vm263 = vcmask 785408
    %264 = vst.msk [vmem:[#allocation8] sm:$0xff] %vm263, %v255
    %265 = vst.msk [vmem:[#allocation8 + $0x8] sm:$0xff] %vm263, %v260
    // Predicated region
    $region34: #{tpu_custom_call.1} parent=1 // pred_check
      _
    $region35: #{tpu_custom_call.1} parent=1 // pred_check_branch
      %267 = sbr.rel (0) target = $region37
    $region36: #{tpu_custom_call.1} parent=1 // pred_region
      %s269 = ssub.s32 256, 256
      %270 = vsyncadd [#allocation4], %s269
      %s271 = sshll.u32 [#allocation8], 4
      %s272 = int_to_ptr.vmem [resolvable:$true] %s271
      %277 = dma.vmem_to_hbm [thread:$0]  %s272, 256, %s5, [#allocation4], 128, 128, 8
    $region37: #{tpu_custom_call.1} parent=1 // pred_fallthru
      _
    // Predicated region
    $region38: #{tpu_custom_call.1} parent=1 // pred_check
      _
    $region39: #{tpu_custom_call.1} parent=1 // pred_check_branch
      %279 = sbr.rel (0) target = $region41
    $region40: #{tpu_custom_call.1} parent=1 // pred_region
      %280 = dma.done [#allocation4], 256
    $region41: #{tpu_custom_call.1} parent=1 // pred_fallthru
      _
    %281 = vsyncpa [#allocation3], 1
    %282 = vsyncpa [#allocation6], 1
    %283 = vsyncpa [#allocation4], 1

</llo_original>
